<compile_context>
chip_gen: v7x
topology: tpu7x:2x2x1
jax: 0.10.0
libtpu: 0.0.40
codegen_flags: <defaults>
</compile_context>

<pallas_src>
import functools

import jax
import jax.numpy as jnp
from jax.experimental import pallas as pl
from jax.experimental.pallas import tpu as pltpu  # noqa: F401  (TPU backend)

NUM_EMBEDDINGS = 50  # nn.Embedding(50, embed_dim)


def _pos_embed_kernel(col_ref, row_ref, out_ref, *, H, W, D):
    # col_ref / row_ref: (D, 50) pre-transposed embedding tables in VMEM
    # (D on sublanes, the 50-entry table on lanes).
    col_dw = col_ref[:, 0:W]  # (D, W)  == col_embed(arange(W)).T
    row_dh = row_ref[:, 0:H]  # (D, H)  == row_embed(arange(H)).T

    # Flattened lane index l = y*W + x.
    # x half: value depends only on x = l % W  -> tile the (D, W) strip H times
    # along the lane axis.
    x_flat = jnp.tile(col_dw, (1, H))                                     # (D, H*W)
    # y half: value depends only on y = l // W -> repeat each column W times.
    y_flat = jnp.broadcast_to(row_dh[:, :, None], (D, H, W)).reshape(D, H * W)

    # Direct stores into disjoint sublane ranges (no concat, no extra copy).
    out_ref[0:D, :] = x_flat.astype(out_ref.dtype)
    out_ref[D:, :] = y_flat.astype(out_ref.dtype)


def positional_embedding(x, col_weight, row_weight):
    """x: (B, C, H, W); col_weight/row_weight: (50, D). Returns (B, 2D, H, W)."""
    B = x.shape[0]
    H, W = int(x.shape[-2]), int(x.shape[-1])
    D = int(col_weight.shape[1])
    if H > NUM_EMBEDDINGS or W > NUM_EMBEDDINGS:
        raise ValueError(f"H={H}, W={W} must both be <= {NUM_EMBEDDINGS}")

    # One-time XLA transpose outside the kernel: (50, D) -> (D, 50).
    col_t = jnp.transpose(col_weight)
    row_t = jnp.transpose(row_weight)

    dtype = col_weight.dtype
    itemsize = jnp.dtype(dtype).itemsize
    cost = pl.CostEstimate(
        flops=0,
        transcendentals=0,
        bytes_accessed=(2 * D * H * W + 2 * NUM_EMBEDDINGS * D) * itemsize,
    )

    kernel = functools.partial(_pos_embed_kernel, H=H, W=W, D=D)

    # Single kernel invocation (no grid): the tables and the (2D, H*W) slab fit
    # comfortably in VMEM for DETR-sized feature maps on v5e/v6e/v7x.
    slab = pl.pallas_call(
        kernel,
        out_shape=jax.ShapeDtypeStruct((2 * D, H * W), dtype),
        cost_estimate=cost,
    )(col_t, row_t)

    pos = slab.reshape(2 * D, H, W)
    # Batch replication in the wrapper: the slab is bit-identical across B, so
    # let XLA broadcast (and ideally fuse into the consumer) instead of writing
    # B identical copies to HBM from inside the kernel.
    return jnp.broadcast_to(pos[None], (B, 2 * D, H, W))


if __name__ == "__main__":
    key = jax.random.PRNGKey(0)
    k_x, k_col, k_row = jax.random.split(key, 3)

    # Small shapes: batch=2, channels=4, spatial 16x16, n_dim=32 -> embed_dim=16.
    B, C, H, W = 2, 4, 16, 16
    n_dim = 32
    D = n_dim // 2

    x = jax.random.normal(k_x, (B, C, H, W), dtype=jnp.float32)
    # Deterministic "uniform_" init of the embedding weights (shape (50, D)).
    col_weight = jax.random.uniform(k_col, (NUM_EMBEDDINGS, D), dtype=jnp.float32)
    row_weight = jax.random.uniform(k_row, (NUM_EMBEDDINGS, D), dtype=jnp.float32)

    pos = positional_embedding(x, col_weight, row_weight)
    pos = jax.block_until_ready(pos)

    # Pure-JAX reference of the PyTorch forward.
    x_embed = col_weight[:W]                                   # (W, D)
    y_embed = row_weight[:H]                                   # (H, D)
    ref = jnp.concatenate(
        [
            jnp.broadcast_to(x_embed[None, :, :], (H, W, D)),  # repeat over rows
            jnp.broadcast_to(y_embed[:, None, :], (H, W, D)),  # repeat over cols
        ],
        axis=-1,
    )                                                          # (H, W, 2D)
    ref = jnp.transpose(ref, (2, 0, 1))[None]                  # (1, 2D, H, W)
    ref = jnp.broadcast_to(ref, (B, 2 * D, H, W))

    assert pos.shape == (B, n_dim, H, W), pos.shape
    assert pos.dtype == jnp.float32
    assert jnp.allclose(pos, ref), "mismatch vs reference"

    print("KERNEL_OK")
</pallas_src>

<mosaic_0001>
module attributes {stable_mosaic.version = 11 : i64} {
  func.func @_pos_embed_kernel(%arg0: memref<16x50xf32, #tpu.memory_space<vmem>>, %arg1: memref<16x50xf32, #tpu.memory_space<vmem>>, %arg2: memref<32x256xf32, #tpu.memory_space<vmem>>) attributes {dimension_semantics = [], scalar_prefetch = 0 : i64, scratch_operands = 0 : i64, tpu.core_type = #tpu.core_type<tc>} {
    %c0 = arith.constant 0 : index
    %c0_0 = arith.constant 0 : index
    %0 = vector.load %arg0[%c0, %c0_0] : memref<16x50xf32, #tpu.memory_space<vmem>>, vector<16x16xf32>
    %c0_1 = arith.constant 0 : index
    %c0_2 = arith.constant 0 : index
    %1 = vector.load %arg1[%c0_1, %c0_2] : memref<16x50xf32, #tpu.memory_space<vmem>>, vector<16x16xf32>
    %2 = tpu.concatenate %0, %0, %0, %0, %0, %0, %0, %0, %0, %0, %0, %0, %0, %0, %0, %0 in 1 : vector<16x16xf32>, vector<16x16xf32>, vector<16x16xf32>, vector<16x16xf32>, vector<16x16xf32>, vector<16x16xf32>, vector<16x16xf32>, vector<16x16xf32>, vector<16x16xf32>, vector<16x16xf32>, vector<16x16xf32>, vector<16x16xf32>, vector<16x16xf32>, vector<16x16xf32>, vector<16x16xf32>, vector<16x16xf32> -> vector<16x256xf32>
    %3 = vector.shape_cast %1 : vector<16x16xf32> to vector<16x16x1xf32>
    %4 = vector.shape_cast %3 : vector<16x16x1xf32> to vector<16x16x1xf32>
    %5 = vector.broadcast %4 : vector<16x16x1xf32> to vector<16x16x16xf32>
    %6 = vector.shape_cast %5 : vector<16x16x16xf32> to vector<16x256xf32>
    %c0_3 = arith.constant 0 : index
    %c0_4 = arith.constant 0 : index
    %7 = vector.load %arg2[%c0_3, %c0_4] : memref<32x256xf32, #tpu.memory_space<vmem>>, vector<16x256xf32>
    tpu.vector_store %arg2[%c0_3, %c0_4], %2 {strides = array<i32>} : memref<32x256xf32, #tpu.memory_space<vmem>>, vector<16x256xf32>,
    %c16 = arith.constant 16 : index
    %c0_5 = arith.constant 0 : index
    %8 = vector.load %arg2[%c16, %c0_5] : memref<32x256xf32, #tpu.memory_space<vmem>>, vector<16x256xf32>
    tpu.vector_store %arg2[%c16, %c0_5], %6 {strides = array<i32>} : memref<32x256xf32, #tpu.memory_space<vmem>>, vector<16x256xf32>,
    return
  }
}

</mosaic_0001>

<llo_original>
// kernel: tpu_custom_call.1
$region0: #{tpu_custom_call.1}
  #allocation0 [shape = 'u32[]', space=smem, size = 0x4, offset = 0x4, fixed_abs, tag = 'smem constant byte address 0x4 - core index']
  #allocation1 [shape = 'u32[144,128]{1,0:T(1,128)}', space=vmem, size = 0x12000, scoped, tag = 'internal scratch']
  %s0 = inlined_call_operand.hbm [shape: f32[16,50], index: 0, kind: input, shape index: {}]
  %s1 = inlined_call_operand.hbm [shape: f32[16,50], index: 1, kind: input, shape index: {}]
  %s2 = inlined_call_operand.hbm [shape: f32[32,256], index: 2, kind: output, shape index: {}]
  %s3 = sld [smem:[#allocation0]]
  $region26: #{tpu_custom_call.1} parent=0
    _
  %s5 = ssub.s32 1, %s3
  %s6 = scalar_select 0, %s5, %s3
  $region1: #{tpu_custom_call.1} parent=0
    #allocation2 [shape = 'u8[8192]{0}', space=vmem, size = 0x2000, scoped, tag = 'input window, operand 0, single buffered']
    #allocation3 [shape = 's32[1]{0}', space=sflag, size = 0x4, scoped, tag = 'scoped memory for tpu_custom_call.1']
    #allocation4 [shape = 's32[1]{0}', space=sflag, size = 0x4, scoped, tag = 'scoped memory for tpu_custom_call.1']
    #allocation5 [shape = 'u8[8192]{0}', space=vmem, size = 0x2000, scoped, tag = 'input window, operand 1, single buffered']
    #allocation6 [shape = 's32[1]{0}', space=sflag, size = 0x4, scoped, tag = 'scoped memory for tpu_custom_call.1']
    #allocation7 [shape = 'u8[32768]{0}', space=vmem, size = 0x8000, scoped, tag = 'output window, operand 0, single buffered']
    %7 = vsyncpa [#allocation3], 0
    %8 = vsyncpa [#allocation6], 0
    %9 = vsyncpa [#allocation4], 0
    // Predicated region
    $region2: #{tpu_custom_call.1} parent=1 // pred_check
      _
    $region3: #{tpu_custom_call.1} parent=1 // pred_check_branch
      %11 = sbr.rel (0) target = $region5
    $region4: #{tpu_custom_call.1} parent=1 // pred_region
      %s13 = ssub.s32 256, 256
      %14 = vsyncadd [#allocation3], %s13
      %s15 = sshll.u32 [#allocation2], 4
      %s16 = int_to_ptr.vmem [resolvable:$true] %s15
      %21 = dma.hbm_to_vmem [thread:$0]  %s0, 256, %s16, [#allocation3], 128, 128, 8
    $region5: #{tpu_custom_call.1} parent=1 // pred_fallthru
      _
    // Predicated region
    $region6: #{tpu_custom_call.1} parent=1 // pred_check
      _
    $region7: #{tpu_custom_call.1} parent=1 // pred_check_branch
      %23 = sbr.rel (0) target = $region9
    $region8: #{tpu_custom_call.1} parent=1 // pred_region
      %s25 = ssub.s32 256, 256
      %26 = vsyncadd [#allocation6], %s25
      %s27 = sshll.u32 [#allocation5], 4
      %s28 = int_to_ptr.vmem [resolvable:$true] %s27
      %33 = dma.hbm_to_vmem [thread:$0]  %s1, 256, %s28, [#allocation6], 128, 128, 8
    $region9: #{tpu_custom_call.1} parent=1 // pred_fallthru
      _
    // Predicated region
    $region10: #{tpu_custom_call.1} parent=1 // pred_check
      _
    $region11: #{tpu_custom_call.1} parent=1 // pred_check_branch
      %35 = sbr.rel (0) target = $region13
    $region12: #{tpu_custom_call.1} parent=1 // pred_region
      %36 = dma.done [#allocation3], 256
    $region13: #{tpu_custom_call.1} parent=1 // pred_fallthru
      _
    // Predicated region
    $region14: #{tpu_custom_call.1} parent=1 // pred_check
      _
    $region15: #{tpu_custom_call.1} parent=1 // pred_check_branch
      %38 = sbr.rel (0) target = $region17
    $region16: #{tpu_custom_call.1} parent=1 // pred_region
      %39 = dma.done [#allocation6], 256
    $region17: #{tpu_custom_call.1} parent=1 // pred_fallthru
      _
    %v40 = vld [vmem:[#allocation2] sm:$0xff]
    %v41 = vld [vmem:[#allocation2 + $0x8] sm:$0xff]
    %v42 = vld [vmem:[#allocation5] sm:$0xff]
    %v43 = vld [vmem:[#allocation5 + $0x8] sm:$0xff]
    %46 = vrot.lane.b32.xlu0 %v40, 16
    %v47 = vpop.permute.xlu0 %46
    %48 = vrot.lane.b32.xlu0 %v41, 16
    %v49 = vpop.permute.xlu0 %48
    %52 = vrot.lane.b32.xlu0 %v40, 32
    %v53 = vpop.permute.xlu0 %52
    %54 = vrot.lane.b32.xlu0 %v41, 32
    %v55 = vpop.permute.xlu0 %54
    %58 = vrot.lane.b32.xlu0 %v40, 48
    %v59 = vpop.permute.xlu0 %58
    %60 = vrot.lane.b32.xlu0 %v41, 48
    %v61 = vpop.permute.xlu0 %60
    %64 = vrot.lane.b32.xlu0 %v40, 64
    %v65 = vpop.permute.xlu0 %64
    %66 = vrot.lane.b32.xlu0 %v41, 64
    %v67 = vpop.permute.xlu0 %66
    %70 = vrot.lane.b32.xlu0 %v40, 80
    %v71 = vpop.permute.xlu0 %70
    %72 = vrot.lane.b32.xlu0 %v41, 80
    %v73 = vpop.permute.xlu0 %72
    %76 = vrot.lane.b32.xlu0 %v40, 96
    %v77 = vpop.permute.xlu0 %76
    %78 = vrot.lane.b32.xlu0 %v41, 96
    %v79 = vpop.permute.xlu0 %78
    %82 = vrot.lane.b32.xlu0 %v40, 112
    %v83 = vpop.permute.xlu0 %82
    %84 = vrot.lane.b32.xlu0 %v41, 112
    %v85 = vpop.permute.xlu0 %84
    %vm88 = vcmask 130048
    %v89 = vsel %vm88, %v40, %v47
    %v90 = vsel %vm88, %v41, %v49
    %vm91 = vcmask 261120
    %v92 = vsel %vm91, %v89, %v53
    %v93 = vsel %vm91, %v90, %v55
    %vm94 = vcmask 392192
    %v95 = vsel %vm94, %v92, %v59
    %v96 = vsel %vm94, %v93, %v61
    %vm97 = vcmask 523264
    %v98 = vsel %vm97, %v95, %v65
    %v99 = vsel %vm97, %v96, %v67
    %vm100 = vcmask 654336
    %v101 = vsel %vm100, %v98, %v71
    %v102 = vsel %vm100, %v99, %v73
    %vm103 = vcmask 785408
    %v104 = vsel %vm103, %v101, %v77
    %v105 = vsel %vm103, %v102, %v79
    %vm106 = vcmask 916480
    %v107 = vsel %vm106, %v104, %v83
    %v108 = vsel %vm106, %v105, %v85
    %v109 = vlaneseq
    %v110 = vshrl.u32 %v109, 7
    %v111 = vsub.s32 0, %v110
    %v112 = vrot.slane %v42, %v111
    %114 = vbcast.lane.b32.xlu0 %v112, 256
    %v115 = vpop.permute.xlu0 %114
    %s117 = sor.u32 256, 8
    %118 = vbcast.lane.b32.xlu0 %v112, %s117
    %v119 = vpop.permute.xlu0 %118
    %v120 = vlaneseq
    %v121 = vshrl.u32 %v120, 7
    %v122 = vsub.s32 1, %v121
    %v123 = vrot.slane %v42, %v122
    %125 = vbcast.lane.b32.xlu0 %v123, 256
    %v126 = vpop.permute.xlu0 %125
    %s128 = sor.u32 256, 8
    %129 = vbcast.lane.b32.xlu0 %v123, %s128
    %v130 = vpop.permute.xlu0 %129
    %v131 = vlaneseq
    %v132 = vshrl.u32 %v131, 7
    %v133 = vsub.s32 2, %v132
    %v134 = vrot.slane %v42, %v133
    %136 = vbcast.lane.b32.xlu0 %v134, 256
    %v137 = vpop.permute.xlu0 %136
    %s139 = sor.u32 256, 8
    %140 = vbcast.lane.b32.xlu0 %v134, %s139
    %v141 = vpop.permute.xlu0 %140
    %v142 = vlaneseq
    %v143 = vshrl.u32 %v142, 7
    %v144 = vsub.s32 3, %v143
    %v145 = vrot.slane %v42, %v144
    %147 = vbcast.lane.b32.xlu0 %v145, 256
    %v148 = vpop.permute.xlu0 %147
    %s150 = sor.u32 256, 8
    %151 = vbcast.lane.b32.xlu0 %v145, %s150
    %v152 = vpop.permute.xlu0 %151
    %v153 = vlaneseq
    %v154 = vshrl.u32 %v153, 7
    %v155 = vsub.s32 4, %v154
    %v156 = vrot.slane %v42, %v155
    %158 = vbcast.lane.b32.xlu0 %v156, 256
    %v159 = vpop.permute.xlu0 %158
    %s161 = sor.u32 256, 8
    %162 = vbcast.lane.b32.xlu0 %v156, %s161
    %v163 = vpop.permute.xlu0 %162
    %v164 = vlaneseq
    %v165 = vshrl.u32 %v164, 7
    %v166 = vsub.s32 5, %v165
    %v167 = vrot.slane %v42, %v166
    %169 = vbcast.lane.b32.xlu0 %v167, 256
    %v170 = vpop.permute.xlu0 %169
    %s172 = sor.u32 256, 8
    %173 = vbcast.lane.b32.xlu0 %v167, %s172
    %v174 = vpop.permute.xlu0 %173
    %v175 = vlaneseq
    %v176 = vshrl.u32 %v175, 7
    %v177 = vsub.s32 6, %v176
    %v178 = vrot.slane %v42, %v177
    %180 = vbcast.lane.b32.xlu0 %v178, 256
    %v181 = vpop.permute.xlu0 %180
    %s183 = sor.u32 256, 8
    %184 = vbcast.lane.b32.xlu0 %v178, %s183
    %v185 = vpop.permute.xlu0 %184
    %v186 = vlaneseq
    %v187 = vshrl.u32 %v186, 7
    %v188 = vsub.s32 7, %v187
    %v189 = vrot.slane %v42, %v188
    %191 = vbcast.lane.b32.xlu0 %v189, 256
    %v192 = vpop.permute.xlu0 %191
    %s194 = sor.u32 256, 8
    %195 = vbcast.lane.b32.xlu0 %v189, %s194
    %v196 = vpop.permute.xlu0 %195
    %v197 = vlaneseq
    %v198 = vshrl.u32 %v197, 7
    %v199 = vsub.s32 0, %v198
    %v200 = vrot.slane %v43, %v199
    %202 = vbcast.lane.b32.xlu0 %v200, 256
    %v203 = vpop.permute.xlu0 %202
    %s205 = sor.u32 256, 8
    %206 = vbcast.lane.b32.xlu0 %v200, %s205
    %v207 = vpop.permute.xlu0 %206
    %v208 = vlaneseq
    %v209 = vshrl.u32 %v208, 7
    %v210 = vsub.s32 1, %v209
    %v211 = vrot.slane %v43, %v210
    %213 = vbcast.lane.b32.xlu0 %v211, 256
    %v214 = vpop.permute.xlu0 %213
    %s216 = sor.u32 256, 8
    %217 = vbcast.lane.b32.xlu0 %v211, %s216
    %v218 = vpop.permute.xlu0 %217
    %v219 = vlaneseq
    %v220 = vshrl.u32 %v219, 7
    %v221 = vsub.s32 2, %v220
    %v222 = vrot.slane %v43, %v221
    %224 = vbcast.lane.b32.xlu0 %v222, 256
    %v225 = vpop.permute.xlu0 %224
    %s227 = sor.u32 256, 8
    %228 = vbcast.lane.b32.xlu0 %v222, %s227
    %v229 = vpop.permute.xlu0 %228
    %v230 = vlaneseq
    %v231 = vshrl.u32 %v230, 7
    %v232 = vsub.s32 3, %v231
    %v233 = vrot.slane %v43, %v232
    %235 = vbcast.lane.b32.xlu0 %v233, 256
    %v236 = vpop.permute.xlu0 %235
    %s238 = sor.u32 256, 8
    %239 = vbcast.lane.b32.xlu0 %v233, %s238
    %v240 = vpop.permute.xlu0 %239
    %v241 = vlaneseq
    %v242 = vshrl.u32 %v241, 7
    %v243 = vsub.s32 4, %v242
    %v244 = vrot.slane %v43, %v243
    %246 = vbcast.lane.b32.xlu0 %v244, 256
    %v247 = vpop.permute.xlu0 %246
    %s249 = sor.u32 256, 8
    %250 = vbcast.lane.b32.xlu0 %v244, %s249
    %v251 = vpop.permute.xlu0 %250
    %v252 = vlaneseq
    %v253 = vshrl.u32 %v252, 7
    %v254 = vsub.s32 5, %v253
    %v255 = vrot.slane %v43, %v254
    %257 = vbcast.lane.b32.xlu0 %v255, 256
    %v258 = vpop.permute.xlu0 %257
    %s260 = sor.u32 256, 8
    %261 = vbcast.lane.b32.xlu0 %v255, %s260
    %v262 = vpop.permute.xlu0 %261
    %v263 = vlaneseq
    %v264 = vshrl.u32 %v263, 7
    %v265 = vsub.s32 6, %v264
    %v266 = vrot.slane %v43, %v265
    %268 = vbcast.lane.b32.xlu0 %v266, 256
    %v269 = vpop.permute.xlu0 %268
    %s271 = sor.u32 256, 8
    %272 = vbcast.lane.b32.xlu0 %v266, %s271
    %v273 = vpop.permute.xlu0 %272
    %v274 = vlaneseq
    %v275 = vshrl.u32 %v274, 7
    %v276 = vsub.s32 7, %v275
    %v277 = vrot.slane %v43, %v276
    %279 = vbcast.lane.b32.xlu0 %v277, 256
    %v280 = vpop.permute.xlu0 %279
    %s282 = sor.u32 256, 8
    %283 = vbcast.lane.b32.xlu0 %v277, %s282
    %v284 = vpop.permute.xlu0 %283
    %v285 = vcombine.low %v115, %v137
    %v286 = vcombine.high %v115, %v137
    %v288 = vunpack.c.l.s4 1983009808
    %v289 = vunpack.c.0.s8 %v288
    %v290 = vlaneseq
    %v291 = vshrl.u32 %v290, 7
    %v292 = vsub.s32 %v289, %v291
    %v293 = vrot.slane %v285, %v292
    %v295 = vunpack.c.l.s4 1983009808
    %v296 = vunpack.c.0.s8 %v295
    %v297 = vlaneseq
    %v298 = vshrl.u32 %v297, 7
    %v299 = vsub.s32 %v296, %v298
    %v300 = vrot.slane %v286, %v299
    %v301 = vcombine.low %v126, %v148
    %v302 = vcombine.high %v126, %v148
    %v304 = vunpack.c.l.s4 1983009808
    %v305 = vunpack.c.0.s8 %v304
    %v306 = vlaneseq
    %v307 = vshrl.u32 %v306, 7
    %v308 = vsub.s32 %v305, %v307
    %v309 = vrot.slane %v301, %v308
    %v311 = vunpack.c.l.s4 1983009808
    %v312 = vunpack.c.0.s8 %v311
    %v313 = vlaneseq
    %v314 = vshrl.u32 %v313, 7
    %v315 = vsub.s32 %v312, %v314
    %v316 = vrot.slane %v302, %v315
    %v317 = vcombine.low %v159, %v181
    %v318 = vcombine.high %v159, %v181
    %v320 = vunpack.c.l.s4 1983009808
    %v321 = vunpack.c.0.s8 %v320
    %v322 = vlaneseq
    %v323 = vshrl.u32 %v322, 7
    %v324 = vsub.s32 %v321, %v323
    %v325 = vrot.slane %v317, %v324
    %v327 = vunpack.c.l.s4 1983009808
    %v328 = vunpack.c.0.s8 %v327
    %v329 = vlaneseq
    %v330 = vshrl.u32 %v329, 7
    %v331 = vsub.s32 %v328, %v330
    %v332 = vrot.slane %v318, %v331
    %v333 = vcombine.low %v170, %v192
    %v334 = vcombine.high %v170, %v192
    %v336 = vunpack.c.l.s4 1983009808
    %v337 = vunpack.c.0.s8 %v336
    %v338 = vlaneseq
    %v339 = vshrl.u32 %v338, 7
    %v340 = vsub.s32 %v337, %v339
    %v341 = vrot.slane %v333, %v340
    %v343 = vunpack.c.l.s4 1983009808
    %v344 = vunpack.c.0.s8 %v343
    %v345 = vlaneseq
    %v346 = vshrl.u32 %v345, 7
    %v347 = vsub.s32 %v344, %v346
    %v348 = vrot.slane %v334, %v347
    %v349 = vcombine.low %v293, %v309
    %v350 = vcombine.high %v293, %v309
    %v352 = vunpack.c.l.s4 1934713408
    %v353 = vunpack.c.0.s8 %v352
    %v354 = vlaneseq
    %v355 = vshrl.u32 %v354, 7
    %v356 = vsub.s32 %v353, %v355
    %v357 = vrot.slane %v349, %v356
    %v359 = vunpack.c.l.s4 1934713408
    %v360 = vunpack.c.0.s8 %v359
    %v361 = vlaneseq
    %v362 = vshrl.u32 %v361, 7
    %v363 = vsub.s32 %v360, %v362
    %v364 = vrot.slane %v350, %v363
    %v365 = vcombine.low %v300, %v316
    %v366 = vcombine.high %v300, %v316
    %v368 = vunpack.c.l.s4 1934713408
    %v369 = vunpack.c.0.s8 %v368
    %v370 = vlaneseq
    %v371 = vshrl.u32 %v370, 7
    %v372 = vsub.s32 %v369, %v371
    %v373 = vrot.slane %v365, %v372
    %v375 = vunpack.c.l.s4 1934713408
    %v376 = vunpack.c.0.s8 %v375
    %v377 = vlaneseq
    %v378 = vshrl.u32 %v377, 7
    %v379 = vsub.s32 %v376, %v378
    %v380 = vrot.slane %v366, %v379
    %v381 = vcombine.low %v325, %v341
    %v382 = vcombine.high %v325, %v341
    %v384 = vunpack.c.l.s4 1934713408
    %v385 = vunpack.c.0.s8 %v384
    %v386 = vlaneseq
    %v387 = vshrl.u32 %v386, 7
    %v388 = vsub.s32 %v385, %v387
    %v389 = vrot.slane %v381, %v388
    %v391 = vunpack.c.l.s4 1934713408
    %v392 = vunpack.c.0.s8 %v391
    %v393 = vlaneseq
    %v394 = vshrl.u32 %v393, 7
    %v395 = vsub.s32 %v392, %v394
    %v396 = vrot.slane %v382, %v395
    %v397 = vcombine.low %v332, %v348
    %v398 = vcombine.high %v332, %v348
    %v400 = vunpack.c.l.s4 1934713408
    %v401 = vunpack.c.0.s8 %v400
    %v402 = vlaneseq
    %v403 = vshrl.u32 %v402, 7
    %v404 = vsub.s32 %v401, %v403
    %v405 = vrot.slane %v397, %v404
    %v407 = vunpack.c.l.s4 1934713408
    %v408 = vunpack.c.0.s8 %v407
    %v409 = vlaneseq
    %v410 = vshrl.u32 %v409, 7
    %v411 = vsub.s32 %v408, %v410
    %v412 = vrot.slane %v398, %v411
    %v413 = vcombine.low %v357, %v389
    %v414 = vcombine.high %v357, %v389
    %v415 = vcombine.low %v364, %v396
    %v416 = vcombine.high %v364, %v396
    %v417 = vcombine.low %v373, %v405
    %v418 = vcombine.high %v373, %v405
    %v419 = vcombine.low %v380, %v412
    %v420 = vcombine.high %v380, %v412
    %v421 = vcombine.low %v203, %v225
    %v422 = vcombine.high %v203, %v225
    %v424 = vunpack.c.l.s4 1983009808
    %v425 = vunpack.c.0.s8 %v424
    %v426 = vlaneseq
    %v427 = vshrl.u32 %v426, 7
    %v428 = vsub.s32 %v425, %v427
    %v429 = vrot.slane %v421, %v428
    %v431 = vunpack.c.l.s4 1983009808
    %v432 = vunpack.c.0.s8 %v431
    %v433 = vlaneseq
    %v434 = vshrl.u32 %v433, 7
    %v435 = vsub.s32 %v432, %v434
    %v436 = vrot.slane %v422, %v435
    %v437 = vcombine.low %v214, %v236
    %v438 = vcombine.high %v214, %v236
    %v440 = vunpack.c.l.s4 1983009808
    %v441 = vunpack.c.0.s8 %v440
    %v442 = vlaneseq
    %v443 = vshrl.u32 %v442, 7
    %v444 = vsub.s32 %v441, %v443
    %v445 = vrot.slane %v437, %v444
    %v447 = vunpack.c.l.s4 1983009808
    %v448 = vunpack.c.0.s8 %v447
    %v449 = vlaneseq
    %v450 = vshrl.u32 %v449, 7
    %v451 = vsub.s32 %v448, %v450
    %v452 = vrot.slane %v438, %v451
    %v453 = vcombine.low %v247, %v269
    %v454 = vcombine.high %v247, %v269
    %v456 = vunpack.c.l.s4 1983009808
    %v457 = vunpack.c.0.s8 %v456
    %v458 = vlaneseq
    %v459 = vshrl.u32 %v458, 7
    %v460 = vsub.s32 %v457, %v459
    %v461 = vrot.slane %v453, %v460
    %v463 = vunpack.c.l.s4 1983009808
    %v464 = vunpack.c.0.s8 %v463
    %v465 = vlaneseq
    %v466 = vshrl.u32 %v465, 7
    %v467 = vsub.s32 %v464, %v466
    %v468 = vrot.slane %v454, %v467
    %v469 = vcombine.low %v258, %v280
    %v470 = vcombine.high %v258, %v280
    %v472 = vunpack.c.l.s4 1983009808
    %v473 = vunpack.c.0.s8 %v472
    %v474 = vlaneseq
    %v475 = vshrl.u32 %v474, 7
    %v476 = vsub.s32 %v473, %v475
    %v477 = vrot.slane %v469, %v476
    %v479 = vunpack.c.l.s4 1983009808
    %v480 = vunpack.c.0.s8 %v479
    %v481 = vlaneseq
    %v482 = vshrl.u32 %v481, 7
    %v483 = vsub.s32 %v480, %v482
    %v484 = vrot.slane %v470, %v483
    %v485 = vcombine.low %v429, %v445
    %v486 = vcombine.high %v429, %v445
    %v488 = vunpack.c.l.s4 1934713408
    %v489 = vunpack.c.0.s8 %v488
    %v490 = vlaneseq
    %v491 = vshrl.u32 %v490, 7
    %v492 = vsub.s32 %v489, %v491
    %v493 = vrot.slane %v485, %v492
    %v495 = vunpack.c.l.s4 1934713408
    %v496 = vunpack.c.0.s8 %v495
    %v497 = vlaneseq
    %v498 = vshrl.u32 %v497, 7
    %v499 = vsub.s32 %v496, %v498
    %v500 = vrot.slane %v486, %v499
    %v501 = vcombine.low %v436, %v452
    %v502 = vcombine.high %v436, %v452
    %v504 = vunpack.c.l.s4 1934713408
    %v505 = vunpack.c.0.s8 %v504
    %v506 = vlaneseq
    %v507 = vshrl.u32 %v506, 7
    %v508 = vsub.s32 %v505, %v507
    %v509 = vrot.slane %v501, %v508
    %v511 = vunpack.c.l.s4 1934713408
    %v512 = vunpack.c.0.s8 %v511
    %v513 = vlaneseq
    %v514 = vshrl.u32 %v513, 7
    %v515 = vsub.s32 %v512, %v514
    %v516 = vrot.slane %v502, %v515
    %v517 = vcombine.low %v461, %v477
    %v518 = vcombine.high %v461, %v477
    %v520 = vunpack.c.l.s4 1934713408
    %v521 = vunpack.c.0.s8 %v520
    %v522 = vlaneseq
    %v523 = vshrl.u32 %v522, 7
    %v524 = vsub.s32 %v521, %v523
    %v525 = vrot.slane %v517, %v524
    %v527 = vunpack.c.l.s4 1934713408
    %v528 = vunpack.c.0.s8 %v527
    %v529 = vlaneseq
    %v530 = vshrl.u32 %v529, 7
    %v531 = vsub.s32 %v528, %v530
    %v532 = vrot.slane %v518, %v531
    %v533 = vcombine.low %v468, %v484
    %v534 = vcombine.high %v468, %v484
    %v536 = vunpack.c.l.s4 1934713408
    %v537 = vunpack.c.0.s8 %v536
    %v538 = vlaneseq
    %v539 = vshrl.u32 %v538, 7
    %v540 = vsub.s32 %v537, %v539
    %v541 = vrot.slane %v533, %v540
    %v543 = vunpack.c.l.s4 1934713408
    %v544 = vunpack.c.0.s8 %v543
    %v545 = vlaneseq
    %v546 = vshrl.u32 %v545, 7
    %v547 = vsub.s32 %v544, %v546
    %v548 = vrot.slane %v534, %v547
    %v549 = vcombine.low %v493, %v525
    %v550 = vcombine.high %v493, %v525
    %v551 = vcombine.low %v500, %v532
    %v552 = vcombine.high %v500, %v532
    %v553 = vcombine.low %v509, %v541
    %v554 = vcombine.high %v509, %v541
    %v555 = vcombine.low %v516, %v548
    %v556 = vcombine.high %v516, %v548
    %v557 = vcombine.low %v119, %v141
    %v558 = vcombine.high %v119, %v141
    %v560 = vunpack.c.l.s4 1983009808
    %v561 = vunpack.c.0.s8 %v560
    %v562 = vlaneseq
    %v563 = vshrl.u32 %v562, 7
    %v564 = vsub.s32 %v561, %v563
    %v565 = vrot.slane %v557, %v564
    %v567 = vunpack.c.l.s4 1983009808
    %v568 = vunpack.c.0.s8 %v567
    %v569 = vlaneseq
    %v570 = vshrl.u32 %v569, 7
    %v571 = vsub.s32 %v568, %v570
    %v572 = vrot.slane %v558, %v571
    %v573 = vcombine.low %v130, %v152
    %v574 = vcombine.high %v130, %v152
    %v576 = vunpack.c.l.s4 1983009808
    %v577 = vunpack.c.0.s8 %v576
    %v578 = vlaneseq
    %v579 = vshrl.u32 %v578, 7
    %v580 = vsub.s32 %v577, %v579
    %v581 = vrot.slane %v573, %v580
    %v583 = vunpack.c.l.s4 1983009808
    %v584 = vunpack.c.0.s8 %v583
    %v585 = vlaneseq
    %v586 = vshrl.u32 %v585, 7
    %v587 = vsub.s32 %v584, %v586
    %v588 = vrot.slane %v574, %v587
    %v589 = vcombine.low %v163, %v185
    %v590 = vcombine.high %v163, %v185
    %v592 = vunpack.c.l.s4 1983009808
    %v593 = vunpack.c.0.s8 %v592
    %v594 = vlaneseq
    %v595 = vshrl.u32 %v594, 7
    %v596 = vsub.s32 %v593, %v595
    %v597 = vrot.slane %v589, %v596
    %v599 = vunpack.c.l.s4 1983009808
    %v600 = vunpack.c.0.s8 %v599
    %v601 = vlaneseq
    %v602 = vshrl.u32 %v601, 7
    %v603 = vsub.s32 %v600, %v602
    %v604 = vrot.slane %v590, %v603
    %v605 = vcombine.low %v174, %v196
    %v606 = vcombine.high %v174, %v196
    %v608 = vunpack.c.l.s4 1983009808
    %v609 = vunpack.c.0.s8 %v608
    %v610 = vlaneseq
    %v611 = vshrl.u32 %v610, 7
    %v612 = vsub.s32 %v609, %v611
    %v613 = vrot.slane %v605, %v612
    %v615 = vunpack.c.l.s4 1983009808
    %v616 = vunpack.c.0.s8 %v615
    %v617 = vlaneseq
    %v618 = vshrl.u32 %v617, 7
    %v619 = vsub.s32 %v616, %v618
    %v620 = vrot.slane %v606, %v619
    %v621 = vcombine.low %v565, %v581
    %v622 = vcombine.high %v565, %v581
    %v624 = vunpack.c.l.s4 1934713408
    %v625 = vunpack.c.0.s8 %v624
    %v626 = vlaneseq
    %v627 = vshrl.u32 %v626, 7
    %v628 = vsub.s32 %v625, %v627
    %v629 = vrot.slane %v621, %v628
    %v631 = vunpack.c.l.s4 1934713408
    %v632 = vunpack.c.0.s8 %v631
    %v633 = vlaneseq
    %v634 = vshrl.u32 %v633, 7
    %v635 = vsub.s32 %v632, %v634
    %v636 = vrot.slane %v622, %v635
    %v637 = vcombine.low %v572, %v588
    %v638 = vcombine.high %v572, %v588
    %v640 = vunpack.c.l.s4 1934713408
    %v641 = vunpack.c.0.s8 %v640
    %v642 = vlaneseq
    %v643 = vshrl.u32 %v642, 7
    %v644 = vsub.s32 %v641, %v643
    %v645 = vrot.slane %v637, %v644
    %v647 = vunpack.c.l.s4 1934713408
    %v648 = vunpack.c.0.s8 %v647
    %v649 = vlaneseq
    %v650 = vshrl.u32 %v649, 7
    %v651 = vsub.s32 %v648, %v650
    %v652 = vrot.slane %v638, %v651
    %v653 = vcombine.low %v597, %v613
    %v654 = vcombine.high %v597, %v613
    %v656 = vunpack.c.l.s4 1934713408
    %v657 = vunpack.c.0.s8 %v656
    %v658 = vlaneseq
    %v659 = vshrl.u32 %v658, 7
    %v660 = vsub.s32 %v657, %v659
    %v661 = vrot.slane %v653, %v660
    %v663 = vunpack.c.l.s4 1934713408
    %v664 = vunpack.c.0.s8 %v663
    %v665 = vlaneseq
    %v666 = vshrl.u32 %v665, 7
    %v667 = vsub.s32 %v664, %v666
    %v668 = vrot.slane %v654, %v667
    %v669 = vcombine.low %v604, %v620
    %v670 = vcombine.high %v604, %v620
    %v672 = vunpack.c.l.s4 1934713408
    %v673 = vunpack.c.0.s8 %v672
    %v674 = vlaneseq
    %v675 = vshrl.u32 %v674, 7
    %v676 = vsub.s32 %v673, %v675
    %v677 = vrot.slane %v669, %v676
    %v679 = vunpack.c.l.s4 1934713408
    %v680 = vunpack.c.0.s8 %v679
    %v681 = vlaneseq
    %v682 = vshrl.u32 %v681, 7
    %v683 = vsub.s32 %v680, %v682
    %v684 = vrot.slane %v670, %v683
    %v685 = vcombine.low %v629, %v661
    %v686 = vcombine.high %v629, %v661
    %v687 = vcombine.low %v636, %v668
    %v688 = vcombine.high %v636, %v668
    %v689 = vcombine.low %v645, %v677
    %v690 = vcombine.high %v645, %v677
    %v691 = vcombine.low %v652, %v684
    %v692 = vcombine.high %v652, %v684
    %v693 = vcombine.low %v207, %v229
    %v694 = vcombine.high %v207, %v229
    %v696 = vunpack.c.l.s4 1983009808
    %v697 = vunpack.c.0.s8 %v696
    %v698 = vlaneseq
    %v699 = vshrl.u32 %v698, 7
    %v700 = vsub.s32 %v697, %v699
    %v701 = vrot.slane %v693, %v700
    %v703 = vunpack.c.l.s4 1983009808
    %v704 = vunpack.c.0.s8 %v703
    %v705 = vlaneseq
    %v706 = vshrl.u32 %v705, 7
    %v707 = vsub.s32 %v704, %v706
    %v708 = vrot.slane %v694, %v707
    %v709 = vcombine.low %v218, %v240
    %v710 = vcombine.high %v218, %v240
    %v712 = vunpack.c.l.s4 1983009808
    %v713 = vunpack.c.0.s8 %v712
    %v714 = vlaneseq
    %v715 = vshrl.u32 %v714, 7
    %v716 = vsub.s32 %v713, %v715
    %v717 = vrot.slane %v709, %v716
    %v719 = vunpack.c.l.s4 1983009808
    %v720 = vunpack.c.0.s8 %v719
    %v721 = vlaneseq
    %v722 = vshrl.u32 %v721, 7
    %v723 = vsub.s32 %v720, %v722
    %v724 = vrot.slane %v710, %v723
    %v725 = vcombine.low %v251, %v273
    %v726 = vcombine.high %v251, %v273
    %v728 = vunpack.c.l.s4 1983009808
    %v729 = vunpack.c.0.s8 %v728
    %v730 = vlaneseq
    %v731 = vshrl.u32 %v730, 7
    %v732 = vsub.s32 %v729, %v731
    %v733 = vrot.slane %v725, %v732
    %v735 = vunpack.c.l.s4 1983009808
    %v736 = vunpack.c.0.s8 %v735
    %v737 = vlaneseq
    %v738 = vshrl.u32 %v737, 7
    %v739 = vsub.s32 %v736, %v738
    %v740 = vrot.slane %v726, %v739
    %v741 = vcombine.low %v262, %v284
    %v742 = vcombine.high %v262, %v284
    %v744 = vunpack.c.l.s4 1983009808
    %v745 = vunpack.c.0.s8 %v744
    %v746 = vlaneseq
    %v747 = vshrl.u32 %v746, 7
    %v748 = vsub.s32 %v745, %v747
    %v749 = vrot.slane %v741, %v748
    %v751 = vunpack.c.l.s4 1983009808
    %v752 = vunpack.c.0.s8 %v751
    %v753 = vlaneseq
    %v754 = vshrl.u32 %v753, 7
    %v755 = vsub.s32 %v752, %v754
    %v756 = vrot.slane %v742, %v755
    %v757 = vcombine.low %v701, %v717
    %v758 = vcombine.high %v701, %v717
    %v760 = vunpack.c.l.s4 1934713408
    %v761 = vunpack.c.0.s8 %v760
    %v762 = vlaneseq
    %v763 = vshrl.u32 %v762, 7
    %v764 = vsub.s32 %v761, %v763
    %v765 = vrot.slane %v757, %v764
    %v767 = vunpack.c.l.s4 1934713408
    %v768 = vunpack.c.0.s8 %v767
    %v769 = vlaneseq
    %v770 = vshrl.u32 %v769, 7
    %v771 = vsub.s32 %v768, %v770
    %v772 = vrot.slane %v758, %v771
    %v773 = vcombine.low %v708, %v724
    %v774 = vcombine.high %v708, %v724
    %v776 = vunpack.c.l.s4 1934713408
    %v777 = vunpack.c.0.s8 %v776
    %v778 = vlaneseq
    %v779 = vshrl.u32 %v778, 7
    %v780 = vsub.s32 %v777, %v779
    %v781 = vrot.slane %v773, %v780
    %v783 = vunpack.c.l.s4 1934713408
    %v784 = vunpack.c.0.s8 %v783
    %v785 = vlaneseq
    %v786 = vshrl.u32 %v785, 7
    %v787 = vsub.s32 %v784, %v786
    %v788 = vrot.slane %v774, %v787
    %v789 = vcombine.low %v733, %v749
    %v790 = vcombine.high %v733, %v749
    %v792 = vunpack.c.l.s4 1934713408
    %v793 = vunpack.c.0.s8 %v792
    %v794 = vlaneseq
    %v795 = vshrl.u32 %v794, 7
    %v796 = vsub.s32 %v793, %v795
    %v797 = vrot.slane %v789, %v796
    %v799 = vunpack.c.l.s4 1934713408
    %v800 = vunpack.c.0.s8 %v799
    %v801 = vlaneseq
    %v802 = vshrl.u32 %v801, 7
    %v803 = vsub.s32 %v800, %v802
    %v804 = vrot.slane %v790, %v803
    %v805 = vcombine.low %v740, %v756
    %v806 = vcombine.high %v740, %v756
    %v808 = vunpack.c.l.s4 1934713408
    %v809 = vunpack.c.0.s8 %v808
    %v810 = vlaneseq
    %v811 = vshrl.u32 %v810, 7
    %v812 = vsub.s32 %v809, %v811
    %v813 = vrot.slane %v805, %v812
    %v815 = vunpack.c.l.s4 1934713408
    %v816 = vunpack.c.0.s8 %v815
    %v817 = vlaneseq
    %v818 = vshrl.u32 %v817, 7
    %v819 = vsub.s32 %v816, %v818
    %v820 = vrot.slane %v806, %v819
    %v821 = vcombine.low %v765, %v797
    %v822 = vcombine.high %v765, %v797
    %v823 = vcombine.low %v772, %v804
    %v824 = vcombine.high %v772, %v804
    %v825 = vcombine.low %v781, %v813
    %v826 = vcombine.high %v781, %v813
    %v827 = vcombine.low %v788, %v820
    %v828 = vcombine.high %v788, %v820
    %831 = vrot.lane.b32.xlu0 %v414, 16
    %v832 = vpop.permute.xlu0 %831
    %833 = vrot.lane.b32.xlu0 %v550, 16
    %v834 = vpop.permute.xlu0 %833
    %839 = vrot.lane.b32.xlu0 %v415, 32
    %v840 = vpop.permute.xlu0 %839
    %841 = vrot.lane.b32.xlu0 %v551, 32
    %v842 = vpop.permute.xlu0 %841
    %847 = vrot.lane.b32.xlu0 %v416, 48
    %v848 = vpop.permute.xlu0 %847
    %849 = vrot.lane.b32.xlu0 %v552, 48
    %v850 = vpop.permute.xlu0 %849
    %855 = vrot.lane.b32.xlu0 %v417, 64
    %v856 = vpop.permute.xlu0 %855
    %857 = vrot.lane.b32.xlu0 %v553, 64
    %v858 = vpop.permute.xlu0 %857
    %863 = vrot.lane.b32.xlu0 %v418, 80
    %v864 = vpop.permute.xlu0 %863
    %865 = vrot.lane.b32.xlu0 %v554, 80
    %v866 = vpop.permute.xlu0 %865
    %871 = vrot.lane.b32.xlu0 %v419, 96
    %v872 = vpop.permute.xlu0 %871
    %873 = vrot.lane.b32.xlu0 %v555, 96
    %v874 = vpop.permute.xlu0 %873
    %879 = vrot.lane.b32.xlu0 %v420, 112
    %v880 = vpop.permute.xlu0 %879
    %881 = vrot.lane.b32.xlu0 %v556, 112
    %v882 = vpop.permute.xlu0 %881
    %887 = vrot.lane.b32.xlu0 %v686, 16
    %v888 = vpop.permute.xlu0 %887
    %889 = vrot.lane.b32.xlu0 %v822, 16
    %v890 = vpop.permute.xlu0 %889
    %895 = vrot.lane.b32.xlu0 %v687, 32
    %v896 = vpop.permute.xlu0 %895
    %897 = vrot.lane.b32.xlu0 %v823, 32
    %v898 = vpop.permute.xlu0 %897
    %903 = vrot.lane.b32.xlu0 %v688, 48
    %v904 = vpop.permute.xlu0 %903
    %905 = vrot.lane.b32.xlu0 %v824, 48
    %v906 = vpop.permute.xlu0 %905
    %911 = vrot.lane.b32.xlu0 %v689, 64
    %v912 = vpop.permute.xlu0 %911
    %913 = vrot.lane.b32.xlu0 %v825, 64
    %v914 = vpop.permute.xlu0 %913
    %919 = vrot.lane.b32.xlu0 %v690, 80
    %v920 = vpop.permute.xlu0 %919
    %921 = vrot.lane.b32.xlu0 %v826, 80
    %v922 = vpop.permute.xlu0 %921
    %927 = vrot.lane.b32.xlu0 %v691, 96
    %v928 = vpop.permute.xlu0 %927
    %929 = vrot.lane.b32.xlu0 %v827, 96
    %v930 = vpop.permute.xlu0 %929
    %935 = vrot.lane.b32.xlu0 %v692, 112
    %v936 = vpop.permute.xlu0 %935
    %937 = vrot.lane.b32.xlu0 %v828, 112
    %v938 = vpop.permute.xlu0 %937
    %v941 = vsel %vm88, %v413, %v832
    %v942 = vsel %vm88, %v549, %v834
    %v943 = vsel %vm91, %v941, %v840
    %v944 = vsel %vm91, %v942, %v842
    %v945 = vsel %vm94, %v943, %v848
    %v946 = vsel %vm94, %v944, %v850
    %v947 = vsel %vm97, %v945, %v856
    %v948 = vsel %vm97, %v946, %v858
    %v949 = vsel %vm100, %v947, %v864
    %v950 = vsel %vm100, %v948, %v866
    %v951 = vsel %vm103, %v949, %v872
    %v952 = vsel %vm103, %v950, %v874
    %v953 = vsel %vm106, %v951, %v880
    %v954 = vsel %vm106, %v952, %v882
    %v955 = vsel %vm88, %v685, %v888
    %v956 = vsel %vm88, %v821, %v890
    %v957 = vsel %vm91, %v955, %v896
    %v958 = vsel %vm91, %v956, %v898
    %v959 = vsel %vm94, %v957, %v904
    %v960 = vsel %vm94, %v958, %v906
    %v961 = vsel %vm97, %v959, %v912
    %v962 = vsel %vm97, %v960, %v914
    %v963 = vsel %vm100, %v961, %v920
    %v964 = vsel %vm100, %v962, %v922
    %v965 = vsel %vm103, %v963, %v928
    %v966 = vsel %vm103, %v964, %v930
    %v967 = vsel %vm106, %v965, %v936
    %v968 = vsel %vm106, %v966, %v938
    %969 = vst [vmem:[#allocation7] sm:$0xff] %v107
    %970 = vst [vmem:[#allocation7 + $0x8] sm:$0xff] %v107
    %971 = vst [vmem:[#allocation7 + $0x10] sm:$0xff] %v108
    %972 = vst [vmem:[#allocation7 + $0x18] sm:$0xff] %v108
    %973 = vst [vmem:[#allocation7 + $0x20] sm:$0xff] %v953
    %974 = vst [vmem:[#allocation7 + $0x28] sm:$0xff] %v967
    %975 = vst [vmem:[#allocation7 + $0x30] sm:$0xff] %v954
    %976 = vst [vmem:[#allocation7 + $0x38] sm:$0xff] %v968
    // Predicated region
    $region18: #{tpu_custom_call.1} parent=1 // pred_check
      _
    $region19: #{tpu_custom_call.1} parent=1 // pred_check_branch
      %978 = sbr.rel (0) target = $region21
    $region20: #{tpu_custom_call.1} parent=1 // pred_region
      %s980 = ssub.s32 1024, 1024
      %981 = vsyncadd [#allocation4], %s980
      %s982 = sshll.u32 [#allocation7], 4
      %s983 = int_to_ptr.vmem [resolvable:$true] %s982
      %988 = dma.vmem_to_hbm [thread:$0]  %s983, 1024, %s2, [#allocation4], 256, 256, 16
    $region21: #{tpu_custom_call.1} parent=1 // pred_fallthru
      _
    // Predicated region
    $region22: #{tpu_custom_call.1} parent=1 // pred_check
      _
    $region23: #{tpu_custom_call.1} parent=1 // pred_check_branch
      %990 = sbr.rel (0) target = $region25
    $region24: #{tpu_custom_call.1} parent=1 // pred_region
      %991 = dma.done [#allocation4], 1024
    $region25: #{tpu_custom_call.1} parent=1 // pred_fallthru
      _
    %992 = vsyncpa [#allocation3], 1
    %993 = vsyncpa [#allocation6], 1
    %994 = vsyncpa [#allocation4], 1

</llo_original>
